<compile_context>
chip_gen: v5e
topology: v5e:2x2
jax: 0.10.0
libtpu: 0.0.40
codegen_flags: <defaults>
</compile_context>

<pallas_src>
import math

import jax
import jax.numpy as jnp
from jax import lax
from jax.experimental import pallas as pl
from jax.experimental.pallas import tpu as pltpu


def attention_fusion_kernel(z_ref, w_ref, wq_t_ref, bq_ref, wkv_t_ref, bv_ref,
                            o_ref):
    z = z_ref[...]                                   # (B,  E)  f32
    w = w_ref[...]                                   # (Vp, E)  f32
    E = z.shape[-1]

    # Q projection: wq_t already holds Wq^T * (1/sqrt(E)); bq likewise scaled.
    q = jnp.dot(z, wq_t_ref[...],
                preferred_element_type=jnp.float32) + bq_ref[...]          # (B, E)

    # Fused K|V projection: one (Vp,E)@(E,2E) matmul, no bias
    # (key bias is softmax-invariant, value bias is applied on the output).
    kv = jnp.dot(w, wkv_t_ref[...],
                 preferred_element_type=jnp.float32)                       # (Vp, 2E)
    k = kv[:, :E]                                    # (Vp, E)  lane-tile-aligned slice
    v = kv[:, E:]                                    # (Vp, E)

    # scores = (Q / sqrt(E)) K^T — scale already folded into Q; contract on the
    # last dims so the MXU consumes K directly without an in-kernel transpose.
    scores = lax.dot_general(
        q, k, dimension_numbers=(((1,), (1,)), ((), ())),
        preferred_element_type=jnp.float32)                                # (B, Vp)

    # Numerically stable softmax over the last (lane) axis.
    m = jnp.max(scores, axis=-1, keepdims=True)
    p = jnp.exp(scores - m)
    # approx=True would route the divide to the otherwise-idle EUP slot but adds
    # ~1e-3 relative error; keep the exact path to match the reference tightly.
    attn = p * pl.reciprocal(jnp.sum(p, axis=-1, keepdims=True), approx=False)

    # attn rows sum to 1, so the value bias is added once on the (B,E) output.
    out = jnp.dot(attn, v, preferred_element_type=jnp.float32) + bv_ref[...]
    o_ref[...] = out.astype(o_ref.dtype)


def attention_fusion(z, w, wq, bq, wk, bk, wv, bv):
    """z:(B,E), w:(Vp,E); wq/wk/wv PyTorch-style (out,in)=(E,E); biases (E,) or (1,E)."""
    B, E = z.shape
    scale = 1.0 / math.sqrt(E)

    bq = jnp.reshape(bq, (1, E)).astype(jnp.float32)
    bv = jnp.reshape(bv, (1, E)).astype(jnp.float32)
    del bk  # key bias is a per-row constant shift on scores -> softmax-invariant

    # One-time host/XLA weight prep (free relative to repeated kernel calls):
    #   transpose to (in,out), fold softmax scale into Q, fuse K|V weights.
    wq_t = (wq.astype(jnp.float32) * scale).T                          # (E, E)
    bq_s = bq * scale                                                  # (1, E)
    wkv_t = jnp.concatenate(
        [wk.astype(jnp.float32).T, wv.astype(jnp.float32).T], axis=1)  # (E, 2E)

    vmem = lambda: pl.BlockSpec(memory_space=pltpu.VMEM)
    return pl.pallas_call(
        attention_fusion_kernel,
        out_shape=jax.ShapeDtypeStruct((B, E), jnp.float32),
        in_specs=[vmem() for _ in range(6)],
        out_specs=vmem(),
    )(z.astype(jnp.float32), w.astype(jnp.float32), wq_t, bq_s, wkv_t, bv)


def attention_fusion_ref(z, w, wq, bq, wk, bk, wv, bv):
    hp = lax.Precision.HIGHEST
    q = jnp.dot(z, wq.T, precision=hp) + jnp.reshape(bq, (1, -1))
    k = jnp.dot(w, wk.T, precision=hp) + jnp.reshape(bk, (1, -1))
    v = jnp.dot(w, wv.T, precision=hp) + jnp.reshape(bv, (1, -1))
    scores = jnp.dot(q, k.T, precision=hp) / math.sqrt(q.shape[-1])
    attn = jax.nn.softmax(scores, axis=-1)
    return jnp.dot(attn, v, precision=hp)


if __name__ == "__main__":
    B = 8      # batch of base embeddings (z) — sublane-aligned
    Vp = 16    # number of reprogrammed embeddings (w)
    E = 128    # embed_dim — lane-dense (multiple of 128)

    key = jax.random.PRNGKey(0)
    keys = jax.random.split(key, 8)

    z = jax.random.normal(keys[0], (B, E), dtype=jnp.float32)
    w = jax.random.normal(keys[1], (Vp, E), dtype=jnp.float32)

    # PyTorch nn.Linear-style uniform init, weights stored as (out, in).
    bound = 1.0 / math.sqrt(E)
    wq = jax.random.uniform(keys[2], (E, E), jnp.float32, -bound, bound)
    wk = jax.random.uniform(keys[3], (E, E), jnp.float32, -bound, bound)
    wv = jax.random.uniform(keys[4], (E, E), jnp.float32, -bound, bound)
    bq = jax.random.uniform(keys[5], (E,), jnp.float32, -bound, bound)
    bk = jax.random.uniform(keys[6], (E,), jnp.float32, -bound, bound)
    bv = jax.random.uniform(keys[7], (E,), jnp.float32, -bound, bound)

    out = attention_fusion(z, w, wq, bq, wk, bk, wv, bv)
    out = jax.block_until_ready(out)

    ref = attention_fusion_ref(z, w, wq, bq, wk, bk, wv, bv)
    assert out.shape == (B, E)
    # Mathematically identical to the reference (key-bias drop and value-bias
    # hoist are exact algebraic identities of softmax attention); tolerance
    # allows for f32 accumulation-order differences on the MXU path.
    assert jnp.allclose(out, ref, atol=1e-4, rtol=1e-4), "mismatch vs reference"

    print("KERNEL_OK")
</pallas_src>

<mosaic_0001>
module attributes {stable_mosaic.version = 11 : i64} {
  func.func @attention_fusion_kernel(%arg0: memref<8x128xf32, #tpu.memory_space<vmem>>, %arg1: memref<16x128xf32, #tpu.memory_space<vmem>>, %arg2: memref<128x128xf32, #tpu.memory_space<vmem>>, %arg3: memref<1x128xf32, #tpu.memory_space<vmem>>, %arg4: memref<128x256xf32, #tpu.memory_space<vmem>>, %arg5: memref<1x128xf32, #tpu.memory_space<vmem>>, %arg6: memref<8x128xf32, #tpu.memory_space<vmem>>) attributes {dimension_semantics = [], scalar_prefetch = 0 : i64, scratch_operands = 0 : i64, tpu.core_type = #tpu.core_type<tc>} {
    %c0 = arith.constant 0 : index
    %c0_0 = arith.constant 0 : index
    %0 = vector.load %arg0[%c0, %c0_0] : memref<8x128xf32, #tpu.memory_space<vmem>>, vector<8x128xf32>
    %c0_1 = arith.constant 0 : index
    %c0_2 = arith.constant 0 : index
    %1 = vector.load %arg1[%c0_1, %c0_2] : memref<16x128xf32, #tpu.memory_space<vmem>>, vector<16x128xf32>
    %c0_3 = arith.constant 0 : index
    %c0_4 = arith.constant 0 : index
    %2 = vector.load %arg2[%c0_3, %c0_4] : memref<128x128xf32, #tpu.memory_space<vmem>>, vector<128x128xf32>
    %cst = arith.constant dense<0.000000e+00> : vector<8x128xf32>
    %3 = tpu.matmul %0, %2, %cst {dimension_numbers = #tpu.dot_dimension_numbers<[1], [0], [0], [1], [0, 0, 1, 1], [], []>} : vector<8x128xf32>, vector<128x128xf32>, vector<8x128xf32> -> vector<8x128xf32>
    %c0_5 = arith.constant 0 : index
    %c0_6 = arith.constant 0 : index
    %4 = vector.load %arg3[%c0_5, %c0_6] : memref<1x128xf32, #tpu.memory_space<vmem>>, vector<1x128xf32>
    %5 = vector.broadcast %4 : vector<1x128xf32> to vector<8x128xf32>
    %6 = arith.addf %3, %5 : vector<8x128xf32>
    %c0_7 = arith.constant 0 : index
    %c0_8 = arith.constant 0 : index
    %7 = vector.load %arg4[%c0_7, %c0_8] : memref<128x256xf32, #tpu.memory_space<vmem>>, vector<128x256xf32>
    %cst_9 = arith.constant dense<0.000000e+00> : vector<16x256xf32>
    %8 = tpu.matmul %1, %7, %cst_9 {dimension_numbers = #tpu.dot_dimension_numbers<[1], [0], [0], [1], [0, 0, 1, 1], [], []>} : vector<16x128xf32>, vector<128x256xf32>, vector<16x256xf32> -> vector<16x256xf32>
    %9 = vector.extract_strided_slice %8 {offsets = [0, 0], sizes = [16, 128], strides = [1, 1]} : vector<16x256xf32> to vector<16x128xf32>
    %10 = vector.extract_strided_slice %8 {offsets = [0, 128], sizes = [16, 128], strides = [1, 1]} : vector<16x256xf32> to vector<16x128xf32>
    %cst_10 = arith.constant dense<0.000000e+00> : vector<8x16xf32>
    %11 = tpu.matmul %6, %9, %cst_10 {dimension_numbers = #tpu.dot_dimension_numbers<[1], [1], [0], [0], [0, 0, 1, 0], [], []>} : vector<8x128xf32>, vector<16x128xf32>, vector<8x16xf32> -> vector<8x16xf32>
    %cst_11 = arith.constant dense<0xFF800000> : vector<8xf32>
    %12 = vector.multi_reduction <maximumf>, %11, %cst_11 [1] : vector<8x16xf32> to vector<8xf32>
    %13 = vector.shape_cast %12 : vector<8xf32> to vector<8x1xf32>
    %14 = vector.broadcast %13 : vector<8x1xf32> to vector<8x16xf32>
    %15 = arith.subf %11, %14 : vector<8x16xf32>
    %16 = math.exp %15 : vector<8x16xf32>
    %cst_12 = arith.constant dense<0.000000e+00> : vector<8xf32>
    %17 = vector.multi_reduction <add>, %16, %cst_12 [1] : vector<8x16xf32> to vector<8xf32>
    %18 = vector.shape_cast %17 : vector<8xf32> to vector<8x1xf32>
    %19 = tpu.reciprocal %18 : vector<8x1xf32> -> vector<8x1xf32>
    %20 = vector.broadcast %19 : vector<8x1xf32> to vector<8x16xf32>
    %21 = arith.mulf %16, %20 : vector<8x16xf32>
    %cst_13 = arith.constant dense<0.000000e+00> : vector<8x128xf32>
    %22 = tpu.matmul %21, %10, %cst_13 {dimension_numbers = #tpu.dot_dimension_numbers<[1], [0], [0], [1], [0, 0, 1, 1], [], []>} : vector<8x16xf32>, vector<16x128xf32>, vector<8x128xf32> -> vector<8x128xf32>
    %c0_14 = arith.constant 0 : index
    %c0_15 = arith.constant 0 : index
    %23 = vector.load %arg5[%c0_14, %c0_15] : memref<1x128xf32, #tpu.memory_space<vmem>>, vector<1x128xf32>
    %24 = vector.broadcast %23 : vector<1x128xf32> to vector<8x128xf32>
    %25 = arith.addf %22, %24 : vector<8x128xf32>
    %c0_16 = arith.constant 0 : index
    %c0_17 = arith.constant 0 : index
    %26 = vector.load %arg6[%c0_16, %c0_17] : memref<8x128xf32, #tpu.memory_space<vmem>>, vector<8x128xf32>
    tpu.vector_store %arg6[%c0_16, %c0_17], %25 {strides = array<i32>} : memref<8x128xf32, #tpu.memory_space<vmem>>, vector<8x128xf32>,
    return
  }
}

</mosaic_0001>

<llo_original>
// kernel: tpu_custom_call.1
$region0: #{tpu_custom_call.1}
  #allocation0 [shape = 'u32[]', space=smem, size = 0x4, offset = 0x4, fixed_abs, tag = 'smem constant byte address 0x4 - core index']
  #allocation1 [shape = 'u32[72,128]{1,0:T(1,128)}', space=vmem, size = 0x9000, scoped, tag = 'internal scratch']
  %s0 = inlined_call_operand.hbm [shape: f32[8,128], index: 0, kind: input, shape index: {}]
  %s1 = inlined_call_operand.hbm [shape: f32[16,128], index: 1, kind: input, shape index: {}]
  %s2 = inlined_call_operand.hbm [shape: f32[128,128], index: 2, kind: input, shape index: {}]
  %s3 = inlined_call_operand.vmem [shape: f32[1,128], index: 3, kind: input, shape index: {}]
  %s4 = inlined_call_operand.hbm [shape: f32[128,256], index: 4, kind: input, shape index: {}]
  %s5 = inlined_call_operand.vmem [shape: f32[1,128], index: 5, kind: input, shape index: {}]
  %s6 = inlined_call_operand.hbm [shape: f32[8,128], index: 6, kind: output, shape index: {}]
  %s7 = sld [smem:[#allocation0]]
  $region50: #{tpu_custom_call.1} parent=0
    _
  %s9 = ssub.s32 1, %s7
  %s10 = scalar_select 0, %s9, %s7
  $region1: #{tpu_custom_call.1} parent=0
    #allocation2 [shape = 'u8[4096]{0}', space=vmem, size = 0x1000, scoped, tag = 'input window, operand 0, single buffered']
    #allocation3 [shape = 's32[1]{0}', space=sflag, size = 0x4, scoped, tag = 'scoped memory for tpu_custom_call.1']
    #allocation4 [shape = 's32[1]{0}', space=sflag, size = 0x4, scoped, tag = 'scoped memory for tpu_custom_call.1']
    #allocation5 [shape = 'u8[8192]{0}', space=vmem, size = 0x2000, scoped, tag = 'input window, operand 1, single buffered']
    #allocation6 [shape = 's32[1]{0}', space=sflag, size = 0x4, scoped, tag = 'scoped memory for tpu_custom_call.1']
    #allocation7 [shape = 'u8[65536]{0}', space=vmem, size = 0x10000, scoped, tag = 'input window, operand 2, single buffered']
    #allocation8 [shape = 'u8[131072]{0}', space=vmem, size = 0x20000, scoped, tag = 'input window, operand 4, single buffered']
    #allocation9 [shape = 's32[1]{0}', space=sflag, size = 0x4, scoped, tag = 'scoped memory for tpu_custom_call.1']
    #allocation10 [shape = 'u8[4096]{0}', space=vmem, size = 0x1000, scoped, tag = 'output window, operand 0, single buffered']
    %11 = vsyncpa [#allocation3], 0
    %12 = vsyncpa [#allocation6], 0
    %13 = vsyncpa [#allocation9], 0
    %14 = vsyncpa [#allocation4], 0
    // Predicated region
    $region2: #{tpu_custom_call.1} parent=1 // pred_check
      _
    $region3: #{tpu_custom_call.1} parent=1 // pred_check_branch
      %16 = sbr.rel (0) target = $region5
    $region4: #{tpu_custom_call.1} parent=1 // pred_region
      %18 = vsyncadd [#allocation3], 0
      %s20 = sshll.u32 %s0, 4
      %s21 = int_to_ptr.hbm [resolvable:$true] %s20
      %s22 = sshll.u32 [#allocation2], 4
      %s23 = int_to_ptr.vmem [resolvable:$true] %s22
      %25 = dma.hbm_to_vmem [thread:$0]  %s21, 128, %s23, [#allocation3]
    $region5: #{tpu_custom_call.1} parent=1 // pred_fallthru
      _
    // Predicated region
    $region6: #{tpu_custom_call.1} parent=1 // pred_check
      _
    $region7: #{tpu_custom_call.1} parent=1 // pred_check_branch
      %27 = sbr.rel (0) target = $region9
    $region8: #{tpu_custom_call.1} parent=1 // pred_region
      %29 = vsyncadd [#allocation6], 0
      %s30 = sshll.u32 %s1, 4
      %s31 = int_to_ptr.hbm [resolvable:$true] %s30
      %s32 = sshll.u32 [#allocation5], 4
      %s33 = int_to_ptr.vmem [resolvable:$true] %s32
      %38 = dma.hbm_to_vmem [thread:$0]  %s31, 256, %s33, [#allocation6], 128, 128, 8
    $region9: #{tpu_custom_call.1} parent=1 // pred_fallthru
      _
    // Predicated region
    $region10: #{tpu_custom_call.1} parent=1 // pred_check
      _
    $region11: #{tpu_custom_call.1} parent=1 // pred_check_branch
      %40 = sbr.rel (0) target = $region13
    $region12: #{tpu_custom_call.1} parent=1 // pred_region
      %42 = vsyncadd [#allocation6], 0
      %s43 = sshll.u32 %s2, 4
      %s44 = int_to_ptr.hbm [resolvable:$true] %s43
      %s45 = sshll.u32 [#allocation7], 4
      %s46 = int_to_ptr.vmem [resolvable:$true] %s45
      %51 = dma.hbm_to_vmem [thread:$0]  %s44, 2048, %s46, [#allocation6], 128, 128, 8
    $region13: #{tpu_custom_call.1} parent=1 // pred_fallthru
      _
    // Predicated region
    $region14: #{tpu_custom_call.1} parent=1 // pred_check
      _
    $region15: #{tpu_custom_call.1} parent=1 // pred_check_branch
      %53 = sbr.rel (0) target = $region17
    $region16: #{tpu_custom_call.1} parent=1 // pred_region
      _
    $region17: #{tpu_custom_call.1} parent=1 // pred_fallthru
      _
    // Predicated region
    $region18: #{tpu_custom_call.1} parent=1 // pred_check
      _
    $region19: #{tpu_custom_call.1} parent=1 // pred_check_branch
      %55 = sbr.rel (0) target = $region21
    $region20: #{tpu_custom_call.1} parent=1 // pred_region
      %57 = vsyncadd [#allocation9], 0
      %s58 = sshll.u32 %s4, 4
      %s59 = int_to_ptr.hbm [resolvable:$true] %s58
      %s60 = sshll.u32 [#allocation8], 4
      %s61 = int_to_ptr.vmem [resolvable:$true] %s60
      %66 = dma.hbm_to_vmem [thread:$0]  %s59, 4096, %s61, [#allocation9], 256, 256, 16
    $region21: #{tpu_custom_call.1} parent=1 // pred_fallthru
      _
    // Predicated region
    $region22: #{tpu_custom_call.1} parent=1 // pred_check
      _
    $region23: #{tpu_custom_call.1} parent=1 // pred_check_branch
      %68 = sbr.rel (0) target = $region25
    $region24: #{tpu_custom_call.1} parent=1 // pred_region
      _
    $region25: #{tpu_custom_call.1} parent=1 // pred_fallthru
      _
    // Predicated region
    $region26: #{tpu_custom_call.1} parent=1 // pred_check
      _
    $region27: #{tpu_custom_call.1} parent=1 // pred_check_branch
      %70 = sbr.rel (0) target = $region29
    $region28: #{tpu_custom_call.1} parent=1 // pred_region
      %72 = dma.done [#allocation3], 128
    $region29: #{tpu_custom_call.1} parent=1 // pred_fallthru
      _
    // Predicated region
    $region30: #{tpu_custom_call.1} parent=1 // pred_check
      _
    $region31: #{tpu_custom_call.1} parent=1 // pred_check_branch
      %74 = sbr.rel (0) target = $region33
    $region32: #{tpu_custom_call.1} parent=1 // pred_region
      %76 = dma.done [#allocation6], 256
    $region33: #{tpu_custom_call.1} parent=1 // pred_fallthru
      _
    // Predicated region
    $region34: #{tpu_custom_call.1} parent=1 // pred_check
      _
    $region35: #{tpu_custom_call.1} parent=1 // pred_check_branch
      %78 = sbr.rel (0) target = $region37
    $region36: #{tpu_custom_call.1} parent=1 // pred_region
      %80 = dma.done [#allocation6], 2048
    $region37: #{tpu_custom_call.1} parent=1 // pred_fallthru
      _
    // Predicated region
    $region38: #{tpu_custom_call.1} parent=1 // pred_check
      _
    $region39: #{tpu_custom_call.1} parent=1 // pred_check_branch
      %82 = sbr.rel (0) target = $region41
    $region40: #{tpu_custom_call.1} parent=1 // pred_region
      %84 = dma.done [#allocation9], 4096
    $region41: #{tpu_custom_call.1} parent=1 // pred_fallthru
      _
    %v85 = vld [vmem:[#allocation2] sm:$0xff]
    %v86 = vld [vmem:[#allocation5] sm:$0xff]
    %v87 = vld [vmem:[#allocation5 + $0x8] sm:$0xff]
    %v88 = vld [vmem:[#allocation7] sm:$0xff]
    %v89 = vld [vmem:[#allocation7 + $0x8] sm:$0xff]
    %v90 = vld [vmem:[#allocation7 + $0x10] sm:$0xff]
    %v91 = vld [vmem:[#allocation7 + $0x18] sm:$0xff]
    %v92 = vld [vmem:[#allocation7 + $0x20] sm:$0xff]
    %v93 = vld [vmem:[#allocation7 + $0x28] sm:$0xff]
    %v94 = vld [vmem:[#allocation7 + $0x30] sm:$0xff]
    %v95 = vld [vmem:[#allocation7 + $0x38] sm:$0xff]
    %v96 = vld [vmem:[#allocation7 + $0x40] sm:$0xff]
    %v97 = vld [vmem:[#allocation7 + $0x48] sm:$0xff]
    %v98 = vld [vmem:[#allocation7 + $0x50] sm:$0xff]
    %v99 = vld [vmem:[#allocation7 + $0x58] sm:$0xff]
    %v100 = vld [vmem:[#allocation7 + $0x60] sm:$0xff]
    %v101 = vld [vmem:[#allocation7 + $0x68] sm:$0xff]
    %v102 = vld [vmem:[#allocation7 + $0x70] sm:$0xff]
    %v103 = vld [vmem:[#allocation7 + $0x78] sm:$0xff]
    %v104 = vld [vmem:[%s3] sm:$0x1]
    %v106 = vperm.slane %v104, 0
    %108 = vmatpush.msra.mxu0 %v103
    %109 = vmatpush.msra.mxu0 %v102
    %110 = vmatpush.msra.mxu0 %v101
    %111 = vmatpush.msra.mxu0 %v100
    %112 = vmatpush.msra.mxu0 %v99
    %113 = vmatpush.msra.mxu0 %v98
    %114 = vmatpush.msra.mxu0 %v97
    %115 = vmatpush.msra.mxu0 %v96
    %116 = vmatpush.msra.mxu0 %v95
    %117 = vmatpush.msra.mxu0 %v94
    %118 = vmatpush.msra.mxu0 %v93
    %119 = vmatpush.msra.mxu0 %v92
    %120 = vmatpush.msra.mxu0 %v91
    %121 = vmatpush.msra.mxu0 %v90
    %122 = vmatpush.msra.mxu0 %v89
    %123 = vmatpush.msra.mxu0 %v88
    %124 = vmatmul.f32.gmra.mxu0 %v85
    %v125 = vpop.f32.mrf.mxu0
    %v126 = vadd.f32 %v106, %v125
    %127 = vdwg.mxu0
    %v128 = vld [vmem:[#allocation8] sm:$0xff]
    %v129 = vld [vmem:[#allocation8 + $0x8] sm:$0xff]
    %v130 = vld [vmem:[#allocation8 + $0x10] sm:$0xff]
    %v131 = vld [vmem:[#allocation8 + $0x18] sm:$0xff]
    %v132 = vld [vmem:[#allocation8 + $0x20] sm:$0xff]
    %v133 = vld [vmem:[#allocation8 + $0x28] sm:$0xff]
    %v134 = vld [vmem:[#allocation8 + $0x30] sm:$0xff]
    %v135 = vld [vmem:[#allocation8 + $0x38] sm:$0xff]
    %v136 = vld [vmem:[#allocation8 + $0x40] sm:$0xff]
    %v137 = vld [vmem:[#allocation8 + $0x48] sm:$0xff]
    %v138 = vld [vmem:[#allocation8 + $0x50] sm:$0xff]
    %v139 = vld [vmem:[#allocation8 + $0x58] sm:$0xff]
    %v140 = vld [vmem:[#allocation8 + $0x60] sm:$0xff]
    %v141 = vld [vmem:[#allocation8 + $0x68] sm:$0xff]
    %v142 = vld [vmem:[#allocation8 + $0x70] sm:$0xff]
    %v143 = vld [vmem:[#allocation8 + $0x78] sm:$0xff]
    %v144 = vld [vmem:[#allocation8 + $0x80] sm:$0xff]
    %v145 = vld [vmem:[#allocation8 + $0x88] sm:$0xff]
    %v146 = vld [vmem:[#allocation8 + $0x90] sm:$0xff]
    %v147 = vld [vmem:[#allocation8 + $0x98] sm:$0xff]
    %v148 = vld [vmem:[#allocation8 + $0xa0] sm:$0xff]
    %v149 = vld [vmem:[#allocation8 + $0xa8] sm:$0xff]
    %v150 = vld [vmem:[#allocation8 + $0xb0] sm:$0xff]
    %v151 = vld [vmem:[#allocation8 + $0xb8] sm:$0xff]
    %v152 = vld [vmem:[#allocation8 + $0xc0] sm:$0xff]
    %v153 = vld [vmem:[#allocation8 + $0xc8] sm:$0xff]
    %v154 = vld [vmem:[#allocation8 + $0xd0] sm:$0xff]
    %v155 = vld [vmem:[#allocation8 + $0xd8] sm:$0xff]
    %v156 = vld [vmem:[#allocation8 + $0xe0] sm:$0xff]
    %v157 = vld [vmem:[#allocation8 + $0xe8] sm:$0xff]
    %v158 = vld [vmem:[#allocation8 + $0xf0] sm:$0xff]
    %v159 = vld [vmem:[#allocation8 + $0xf8] sm:$0xff]
    %160 = vmatpush.msra.mxu0 %v158
    %161 = vmatpush.msra.mxu0 %v156
    %162 = vmatpush.msra.mxu0 %v154
    %163 = vmatpush.msra.mxu0 %v152
    %164 = vmatpush.msra.mxu0 %v150
    %165 = vmatpush.msra.mxu0 %v148
    %166 = vmatpush.msra.mxu0 %v146
    %167 = vmatpush.msra.mxu0 %v144
    %168 = vmatpush.msra.mxu0 %v142
    %169 = vmatpush.msra.mxu0 %v140
    %170 = vmatpush.msra.mxu0 %v138
    %171 = vmatpush.msra.mxu0 %v136
    %172 = vmatpush.msra.mxu0 %v134
    %173 = vmatpush.msra.mxu0 %v132
    %174 = vmatpush.msra.mxu0 %v130
    %175 = vmatpush.msra.mxu0 %v128
    %176 = vmatmul.f32.gmra.mxu0 %v86
    %v177 = vpop.f32.mrf.mxu0
    %v178 = vadd.f32 0.0, %v177
    %179 = vmatmul.f32.gmra.mxu0 %v87
    %v180 = vpop.f32.mrf.mxu0
    %v181 = vadd.f32 0.0, %v180
    %182 = vdwg.mxu0
    %183 = vmatpush.msra.mxu0 %v159
    %184 = vmatpush.msra.mxu0 %v157
    %185 = vmatpush.msra.mxu0 %v155
    %186 = vmatpush.msra.mxu0 %v153
    %187 = vmatpush.msra.mxu0 %v151
    %188 = vmatpush.msra.mxu0 %v149
    %189 = vmatpush.msra.mxu0 %v147
    %190 = vmatpush.msra.mxu0 %v145
    %191 = vmatpush.msra.mxu0 %v143
    %192 = vmatpush.msra.mxu0 %v141
    %193 = vmatpush.msra.mxu0 %v139
    %194 = vmatpush.msra.mxu0 %v137
    %195 = vmatpush.msra.mxu0 %v135
    %196 = vmatpush.msra.mxu0 %v133
    %197 = vmatpush.msra.mxu0 %v131
    %198 = vmatpush.msra.mxu0 %v129
    %199 = vmatmul.f32.gmra.mxu0 %v86
    %v200 = vpop.f32.mrf.mxu0
    %v201 = vadd.f32 0.0, %v200
    %202 = vmatmul.f32.gmra.mxu0 %v87
    %v203 = vpop.f32.mrf.mxu0
    %v204 = vadd.f32 0.0, %v203
    %205 = vdwg.mxu0
    %206 = vmatpush.xpose.msra.mxu0 0.0
    %207 = vmatpush.xpose.msra.mxu0 0.0
    %208 = vmatpush.xpose.msra.mxu0 0.0
    %209 = vmatpush.xpose.msra.mxu0 0.0
    %210 = vmatpush.xpose.msra.mxu0 0.0
    %211 = vmatpush.xpose.msra.mxu0 0.0
    %212 = vmatpush.xpose.msra.mxu0 0.0
    %213 = vmatpush.xpose.msra.mxu0 0.0
    %214 = vmatpush.xpose.msra.mxu0 0.0
    %215 = vmatpush.xpose.msra.mxu0 0.0
    %216 = vmatpush.xpose.msra.mxu0 0.0
    %217 = vmatpush.xpose.msra.mxu0 0.0
    %218 = vmatpush.xpose.msra.mxu0 0.0
    %219 = vmatpush.xpose.msra.mxu0 0.0
    %220 = vmatpush.xpose.msra.mxu0 %v181
    %221 = vmatpush.xpose.msra.mxu0 %v178
    %222 = vmatmul.f32.gmra.mxu0 %v126
    %v223 = vpop.f32.mrf.mxu0
    %v224 = vadd.f32 0.0, %v223
    %225 = vdwg.mxu0
    %vm226 = vcmask 130048
    %v227 = vsel %vm226, %v224, -inf
    %228 = vmax.xlane.f32.xlu0 %v227
    %v229 = vpop.xlane.xlu0 %228
    %v230 = vsub.f32 %v224, %v229
    %v231 = vmul.f32 %v230, 1.442695
    %v232 = vpow.pop %v231
    %v233 = vsel %vm226, %v232, 0.0
    %234 = vadd.xlane.f32.xlu0 %v233
    %v235 = vpop.xlane.xlu0 %234
    %v236 = vrcp.pop %v235
    %v237 = vmul.f32 %v235, %v236
    %v238 = vsub.f32 1.0, %v237
    %v239 = vmul.f32 %v236, %v238
    %v240 = vadd.f32 %v236, %v239
    %vm241 = vweird.f32 %v235
    %vm242 = vweird.f32 %v236
    %vm243 = vmor %vm241, %vm242
    %v244 = vsel %vm243, %v236, %v240
    %v245 = vand.u32 2147483647, %v235
    %vm246 = vcmp.eq.f32.partialorder %v245, 8.507059e+37
    %v247 = vand.u32 %v235, 2147483648
    %v248 = vor.u32 1.1754944e-38, %v247
    %v249 = vsel %vm246, %v248, %v244
    %v250 = vmul.f32 %v232, %v249
    %v251 = vld [vmem:[%s5] sm:$0x1]
    %v253 = vperm.slane %v251, 0
    %v256 = vsel %vm226, %v250, 0
    %258 = vmatpush.msra.mxu0 0.0
    %259 = vmatpush.msra.mxu0 0.0
    %260 = vmatpush.msra.mxu0 0.0
    %261 = vmatpush.msra.mxu0 0.0
    %262 = vmatpush.msra.mxu0 0.0
    %263 = vmatpush.msra.mxu0 0.0
    %264 = vmatpush.msra.mxu0 0.0
    %265 = vmatpush.msra.mxu0 0.0
    %266 = vmatpush.msra.mxu0 0.0
    %267 = vmatpush.msra.mxu0 0.0
    %268 = vmatpush.msra.mxu0 0.0
    %269 = vmatpush.msra.mxu0 0.0
    %270 = vmatpush.msra.mxu0 0.0
    %271 = vmatpush.msra.mxu0 0.0
    %272 = vmatpush.msra.mxu0 %v204
    %273 = vmatpush.msra.mxu0 %v201
    %274 = vmatmul.f32.gmra.mxu0 %v256
    %v275 = vpop.f32.mrf.mxu0
    %v276 = vadd.f32 %v253, %v275
    %277 = vdwg.mxu0
    %278 = vst [vmem:[#allocation10] sm:$0xff] %v276
    // Predicated region
    $region42: #{tpu_custom_call.1} parent=1 // pred_check
      _
    $region43: #{tpu_custom_call.1} parent=1 // pred_check_branch
      %280 = sbr.rel (0) target = $region45
    $region44: #{tpu_custom_call.1} parent=1 // pred_region
      %282 = vsyncadd [#allocation4], 0
      %s284 = sshll.u32 [#allocation10], 4
      %s285 = int_to_ptr.vmem [resolvable:$true] %s284
      %s286 = sshll.u32 %s6, 4
      %s287 = int_to_ptr.hbm [resolvable:$true] %s286
      %289 = dma.vmem_to_hbm [thread:$0]  %s285, 128, %s287, [#allocation4]
    $region45: #{tpu_custom_call.1} parent=1 // pred_fallthru
      _
    // Predicated region
    $region46: #{tpu_custom_call.1} parent=1 // pred_check
      _
    $region47: #{tpu_custom_call.1} parent=1 // pred_check_branch
      %291 = sbr.rel (0) target = $region49
    $region48: #{tpu_custom_call.1} parent=1 // pred_region
      %293 = dma.done [#allocation4], 128
    $region49: #{tpu_custom_call.1} parent=1 // pred_fallthru
      _
    %294 = vsyncpa [#allocation3], 1
    %295 = vsyncpa [#allocation6], 1
    %296 = vsyncpa [#allocation9], 1
    %297 = vsyncpa [#allocation4], 1

</llo_original>
